<compile_context>
chip_gen: v5e
topology: v5e:2x2
jax: 0.10.0
libtpu: 0.0.40
codegen_flags: <defaults>
</compile_context>

<pallas_src>
import functools

import jax
import jax.numpy as jnp
from jax.experimental import pallas as pl
from jax.experimental.pallas import tpu as pltpu


def _mlp_kernel(x_ref, w1_ref, b1_ref, w2_ref, b2_ref, w3_ref, b3_ref, o_ref):
    # x tile: [5, TILE_B]. Weights/biases: full arrays, VMEM-resident.
    ew = b1_ref.dtype          # elementwise dtype for bias-add / ReLU
    x = x_ref[...]

    # fc1 + ReLU : [64,5] @ [5,TILE_B] -> [64,TILE_B], f32 MXU accumulation.
    h1 = jnp.dot(w1_ref[...], x, preferred_element_type=jnp.float32)
    h1 = jnp.maximum(h1.astype(ew) + b1_ref[...], 0).astype(w2_ref.dtype)

    # fc2 + ReLU : [32,64] @ [64,TILE_B] -> [32,TILE_B].
    h2 = jnp.dot(w2_ref[...], h1, preferred_element_type=jnp.float32)
    h2 = jnp.maximum(h2.astype(ew) + b2_ref[...], 0).astype(w3_ref.dtype)

    # fc3 : [1,32] @ [32,TILE_B] -> [1,TILE_B]  (lane-dense output row, f32).
    out = jnp.dot(w3_ref[...], h2, preferred_element_type=jnp.float32) + b3_ref[...]
    o_ref[...] = out.astype(o_ref.dtype)


def _round_up(a, m):
    return (a + m - 1) // m * m


# Safe scoped-VMEM ceiling on every generation: v7x has 64 MiB/TC physical,
# v5e/v6e have 128 MiB; 48 MiB leaves headroom everywhere.
_VMEM_CAP_BYTES = 48 * 1024 * 1024


def _scratch_bytes_per_lane(in_bytes, ew_bytes):
    # x double-buffer + out double-buffer + f32 MXU accumulators + h1/h2
    # intermediates in the elementwise dtype.
    return (5 * in_bytes * 2          # x stream, 2 buffers
            + 1 * 4 * 2               # f32 out stream, 2 buffers
            + 64 * 4 + 64 * ew_bytes  # fc1 acc + h1
            + 32 * 4 + 32 * ew_bytes) # fc2 acc + h2


@functools.partial(jax.jit, static_argnames=("tile_b", "input_dtype", "ew_dtype"))
def simple_nn_forward(x, params, *, tile_b=16384,
                      input_dtype=jnp.bfloat16, ew_dtype=None):
    """x: [B, 5] float32. params: w1 [64,5], b1 [64,1], w2 [32,64], b2 [32,1],
    w3 [1,32], b3 [1,1] (PyTorch [out, in] layout). Returns [B, 1] float32.

    input_dtype: dtype used to stream x and the weights (bf16 default for perf).
    ew_dtype: dtype for bias-add / ReLU (defaults to input_dtype; use f32 on
    v5e or for exact PyTorch-module numerics together with input_dtype=f32).
    """
    B, F = x.shape
    assert F == 5, x.shape
    if ew_dtype is None:
        ew_dtype = input_dtype
    in_bytes = jnp.dtype(input_dtype).itemsize
    ew_bytes = jnp.dtype(ew_dtype).itemsize

    # ---- Tile selection --------------------------------------------------
    tile_b = _round_up(tile_b, 128)            # batch sits on the lane dim
    b_cap = _round_up(B, 128)
    tile_b = min(tile_b, b_cap)
    if b_cap >= 256:
        # Keep >= 2 grid steps so ("parallel",) can shard across both v7x TCs.
        tile_b = min(tile_b, _round_up(pl.cdiv(b_cap, 2), 128))
    # Shrink the tile if its scratch footprint would blow the VMEM ceiling.
    while tile_b > 128 and _scratch_bytes_per_lane(in_bytes, ew_bytes) * tile_b > _VMEM_CAP_BYTES:
        tile_b = max(128, _round_up(tile_b // 2, 128))

    b_pad = _round_up(B, tile_b)
    grid = (b_pad // tile_b,)

    vmem_limit = min(
        _VMEM_CAP_BYTES,
        max(32 * 1024 * 1024,
            int(1.25 * _scratch_bytes_per_lane(in_bytes, ew_bytes) * tile_b)
            + (1 << 20)))

    # ---- Lane-dense relayout (cast first so the transpose/pad move 2-byte
    # elements and fuse under this jit) -------------------------------------
    xt = jnp.pad(x.astype(input_dtype).T, ((0, 0), (0, b_pad - B)))

    w1 = params["w1"].astype(input_dtype)
    w2 = params["w2"].astype(input_dtype)
    w3 = params["w3"].astype(input_dtype)
    b1 = params["b1"].astype(ew_dtype)
    b2 = params["b2"].astype(ew_dtype)
    b3 = params["b3"].astype(jnp.float32)      # final bias added in f32

    def resident(a):  # VMEM-resident across all grid steps
        return pl.BlockSpec(a.shape, lambda i: (0, 0))

    out_t = pl.pallas_call(
        _mlp_kernel,
        out_shape=jax.ShapeDtypeStruct((1, b_pad), jnp.float32),
        grid=grid,
        in_specs=[
            pl.BlockSpec((5, tile_b), lambda i: (0, i)),   # x: tiled along batch
            resident(w1), resident(b1),
            resident(w2), resident(b2),
            resident(w3), resident(b3),
        ],
        out_specs=pl.BlockSpec((1, tile_b), lambda i: (0, i)),
        compiler_params=pltpu.CompilerParams(
            dimension_semantics=("parallel",),
            vmem_limit_bytes=vmem_limit,
        ),
    )(xt, w1, b1, w2, b2, w3, b3)

    # Drop batch padding, back to [B, 1].
    return out_t[:, :B].T


def init_params(key):
    """Deterministic init mirroring nn.Linear: weights [out, in], biases [out, 1]."""
    ks = jax.random.split(key, 6)

    def lin(kw, kb, fan_in, fan_out):
        bound = 1.0 / jnp.sqrt(fan_in)
        w = jax.random.uniform(kw, (fan_out, fan_in), jnp.float32, -bound, bound)
        b = jax.random.uniform(kb, (fan_out, 1), jnp.float32, -bound, bound)
        return w, b

    w1, b1 = lin(ks[0], ks[1], 5, 64)
    w2, b2 = lin(ks[2], ks[3], 64, 32)
    w3, b3 = lin(ks[4], ks[5], 32, 1)
    return {"w1": w1, "b1": b1, "w2": w2, "b2": b2, "w3": w3, "b3": b3}


def reference_forward(x, p):
    h1 = jnp.maximum(x @ p["w1"].T + p["b1"].T, 0.0)
    h2 = jnp.maximum(h1 @ p["w2"].T + p["b2"].T, 0.0)
    return h2 @ p["w3"].T + p["b3"].T


if __name__ == "__main__":
    key = jax.random.PRNGKey(0)
    k_params, k_x1, k_x2 = jax.random.split(key, 3)

    params = init_params(k_params)

    # --- Small batch (single grid step), exact-semantics f32 path ----------
    x_small = jax.random.normal(k_x1, (8, 5), jnp.float32)
    out_f32 = jax.block_until_ready(
        simple_nn_forward(x_small, params,
                          input_dtype=jnp.float32, ew_dtype=jnp.float32))
    ref_small = reference_forward(x_small, params)
    assert out_f32.shape == (8, 1), out_f32.shape
    assert jnp.allclose(out_f32, ref_small, atol=1e-4, rtol=1e-4), "f32 mismatch"

    # --- bf16-streamed default path (perf): loose check vs f32 reference ---
    out_bf16 = jax.block_until_ready(simple_nn_forward(x_small, params))
    assert out_bf16.shape == (8, 1), out_bf16.shape
    assert jnp.allclose(out_bf16, ref_small, atol=5e-2, rtol=5e-2), "bf16 mismatch"

    # --- Ragged batch (exercises multi-step grid + padding path) -----------
    x_big = jax.random.normal(k_x2, (300, 5), jnp.float32)
    out_big = jax.block_until_ready(
        simple_nn_forward(x_big, params,
                          input_dtype=jnp.float32, ew_dtype=jnp.float32))
    ref_big = reference_forward(x_big, params)
    assert out_big.shape == (300, 1), out_big.shape
    assert jnp.allclose(out_big, ref_big, atol=1e-4, rtol=1e-4), "ragged mismatch"

    print("KERNEL_OK")
</pallas_src>

<mosaic_0001>
module attributes {stable_mosaic.version = 11 : i64} {
  func.func @_mlp_kernel(%arg0: i32, %arg1: memref<5x128xf32, #tpu.memory_space<vmem>>, %arg2: memref<64x5xf32, #tpu.memory_space<vmem>>, %arg3: memref<64x1xf32, #tpu.memory_space<vmem>>, %arg4: memref<32x64xf32, #tpu.memory_space<vmem>>, %arg5: memref<32x1xf32, #tpu.memory_space<vmem>>, %arg6: memref<1x32xf32, #tpu.memory_space<vmem>>, %arg7: memref<1x1xf32, #tpu.memory_space<vmem>>, %arg8: memref<1x128xf32, #tpu.memory_space<vmem>>) attributes {dimension_semantics = [#tpu.dimension_semantics<parallel>], iteration_bounds = array<i64: 1>, scalar_prefetch = 0 : i64, scratch_operands = 0 : i64, tpu.core_type = #tpu.core_type<tc>, window_params = [{transform_indices = @transform_0, window_bounds = array<i64: 5, 128>}, {pipeline_mode = #tpu.pipeline_mode<synchronous>, transform_indices = @transform_1, window_bounds = array<i64: 64, 5>}, {pipeline_mode = #tpu.pipeline_mode<synchronous>, transform_indices = @transform_2, window_bounds = array<i64: 64, 1>}, {pipeline_mode = #tpu.pipeline_mode<synchronous>, transform_indices = @transform_3, window_bounds = array<i64: 32, 64>}, {pipeline_mode = #tpu.pipeline_mode<synchronous>, transform_indices = @transform_4, window_bounds = array<i64: 32, 1>}, {pipeline_mode = #tpu.pipeline_mode<synchronous>, transform_indices = @transform_5, window_bounds = array<i64: 1, 32>}, {pipeline_mode = #tpu.pipeline_mode<synchronous>, transform_indices = @transform_6, window_bounds = array<i64: 1, 1>}, {transform_indices = @transform_7, window_bounds = array<i64: 1, 128>}]} {
    %c0 = arith.constant 0 : index
    %c0_0 = arith.constant 0 : index
    %0 = vector.load %arg1[%c0, %c0_0] : memref<5x128xf32, #tpu.memory_space<vmem>>, vector<5x128xf32>
    %c0_1 = arith.constant 0 : index
    %c0_2 = arith.constant 0 : index
    %1 = vector.load %arg2[%c0_1, %c0_2] : memref<64x5xf32, #tpu.memory_space<vmem>>, vector<64x5xf32>
    %cst = arith.constant dense<0.000000e+00> : vector<64x128xf32>
    %2 = tpu.matmul %1, %0, %cst {dimension_numbers = #tpu.dot_dimension_numbers<[1], [0], [0], [1], [0, 0, 1, 1], [], []>} : vector<64x5xf32>, vector<5x128xf32>, vector<64x128xf32> -> vector<64x128xf32>
    %c0_3 = arith.constant 0 : index
    %c0_4 = arith.constant 0 : index
    %3 = vector.load %arg3[%c0_3, %c0_4] : memref<64x1xf32, #tpu.memory_space<vmem>>, vector<64x1xf32>
    %4 = vector.broadcast %3 : vector<64x1xf32> to vector<64x128xf32>
    %5 = arith.addf %2, %4 : vector<64x128xf32>
    %cst_5 = arith.constant 0.000000e+00 : f32
    %6 = vector.broadcast %cst_5 : f32 to vector<64x128xf32>
    %7 = arith.maximumf %5, %6 : vector<64x128xf32>
    %c0_6 = arith.constant 0 : index
    %c0_7 = arith.constant 0 : index
    %8 = vector.load %arg4[%c0_6, %c0_7] : memref<32x64xf32, #tpu.memory_space<vmem>>, vector<32x64xf32>
    %cst_8 = arith.constant dense<0.000000e+00> : vector<32x128xf32>
    %9 = tpu.matmul %8, %7, %cst_8 {dimension_numbers = #tpu.dot_dimension_numbers<[1], [0], [0], [1], [0, 0, 1, 1], [], []>} : vector<32x64xf32>, vector<64x128xf32>, vector<32x128xf32> -> vector<32x128xf32>
    %c0_9 = arith.constant 0 : index
    %c0_10 = arith.constant 0 : index
    %10 = vector.load %arg5[%c0_9, %c0_10] : memref<32x1xf32, #tpu.memory_space<vmem>>, vector<32x1xf32>
    %11 = vector.broadcast %10 : vector<32x1xf32> to vector<32x128xf32>
    %12 = arith.addf %9, %11 : vector<32x128xf32>
    %cst_11 = arith.constant 0.000000e+00 : f32
    %13 = vector.broadcast %cst_11 : f32 to vector<32x128xf32>
    %14 = arith.maximumf %12, %13 : vector<32x128xf32>
    %c0_12 = arith.constant 0 : index
    %c0_13 = arith.constant 0 : index
    %15 = vector.load %arg6[%c0_12, %c0_13] : memref<1x32xf32, #tpu.memory_space<vmem>>, vector<1x32xf32>
    %cst_14 = arith.constant dense<0.000000e+00> : vector<1x128xf32>
    %16 = tpu.matmul %15, %14, %cst_14 {dimension_numbers = #tpu.dot_dimension_numbers<[1], [0], [0], [1], [0, 0, 1, 1], [], []>} : vector<1x32xf32>, vector<32x128xf32>, vector<1x128xf32> -> vector<1x128xf32>
    %c0_15 = arith.constant 0 : index
    %c0_16 = arith.constant 0 : index
    %17 = vector.load %arg7[%c0_15, %c0_16] : memref<1x1xf32, #tpu.memory_space<vmem>>, vector<1x1xf32>
    %18 = vector.broadcast %17 : vector<1x1xf32> to vector<1x128xf32>
    %19 = arith.addf %16, %18 : vector<1x128xf32>
    %c0_17 = arith.constant 0 : index
    %c0_18 = arith.constant 0 : index
    %20 = vector.load %arg8[%c0_17, %c0_18] : memref<1x128xf32, #tpu.memory_space<vmem>>, vector<1x128xf32>
    tpu.vector_store %arg8[%c0_17, %c0_18], %19 {strides = array<i32>} : memref<1x128xf32, #tpu.memory_space<vmem>>, vector<1x128xf32>,
    return
  }
  func.func @transform_0(%arg0: i32) -> (i32, i32) {
    %c0_i32 = arith.constant 0 : i32
    %c0_i32_0 = arith.constant 0 : i32
    return %c0_i32, %arg0 : i32, i32
  }
  func.func @transform_1(%arg0: i32) -> (i32, i32) {
    %c0_i32 = arith.constant 0 : i32
    %c0_i32_0 = arith.constant 0 : i32
    %c0_i32_1 = arith.constant 0 : i32
    return %c0_i32, %c0_i32_0 : i32, i32
  }
  func.func @transform_2(%arg0: i32) -> (i32, i32) {
    %c0_i32 = arith.constant 0 : i32
    %c0_i32_0 = arith.constant 0 : i32
    %c0_i32_1 = arith.constant 0 : i32
    return %c0_i32, %c0_i32_0 : i32, i32
  }
  func.func @transform_3(%arg0: i32) -> (i32, i32) {
    %c0_i32 = arith.constant 0 : i32
    %c0_i32_0 = arith.constant 0 : i32
    %c0_i32_1 = arith.constant 0 : i32
    return %c0_i32, %c0_i32_0 : i32, i32
  }
  func.func @transform_4(%arg0: i32) -> (i32, i32) {
    %c0_i32 = arith.constant 0 : i32
    %c0_i32_0 = arith.constant 0 : i32
    %c0_i32_1 = arith.constant 0 : i32
    return %c0_i32, %c0_i32_0 : i32, i32
  }
  func.func @transform_5(%arg0: i32) -> (i32, i32) {
    %c0_i32 = arith.constant 0 : i32
    %c0_i32_0 = arith.constant 0 : i32
    %c0_i32_1 = arith.constant 0 : i32
    return %c0_i32, %c0_i32_0 : i32, i32
  }
  func.func @transform_6(%arg0: i32) -> (i32, i32) {
    %c0_i32 = arith.constant 0 : i32
    %c0_i32_0 = arith.constant 0 : i32
    %c0_i32_1 = arith.constant 0 : i32
    return %c0_i32, %c0_i32_0 : i32, i32
  }
  func.func @transform_7(%arg0: i32) -> (i32, i32) {
    %c0_i32 = arith.constant 0 : i32
    %c0_i32_0 = arith.constant 0 : i32
    return %c0_i32, %arg0 : i32, i32
  }
}

</mosaic_0001>

<llo_original>
// kernel: simple_nn_forward.1
$region0: #{simple_nn_forward.1}
  #allocation0 [shape = 'u32[]', space=smem, size = 0x4, offset = 0x4, fixed_abs, tag = 'smem constant byte address 0x4 - core index']
  #allocation1 [shape = 'u32[72,128]{1,0:T(1,128)}', space=vmem, size = 0x9000, scoped, tag = 'internal scratch']
  #allocation2 [shape = 'f32[1,1]{1,0:T(1,128)S(1)}', space=vmem, size = 0x200, scoped, tag = 'scoped memory for simple_nn_forward.1']
  %s0 = inlined_call_operand.vmem [shape: f32[5,128], index: 0, kind: input, shape index: {}]
  %s1 = inlined_call_operand.vmem [shape: f32[64,5], index: 1, kind: input, shape index: {}]
  %s2 = inlined_call_operand.vmem [shape: f32[64,1], index: 2, kind: input, shape index: {}]
  %s3 = inlined_call_operand.vmem [shape: f32[32,64], index: 3, kind: input, shape index: {}]
  %s4 = inlined_call_operand.vmem [shape: f32[32,1], index: 4, kind: input, shape index: {}]
  %s5 = inlined_call_operand.vmem [shape: f32[1,32], index: 5, kind: input, shape index: {}]
  %s6 = inlined_call_operand.<no memory space> [shape: f32[1,1], index: 6, kind: input, shape index: {}]
  %s7 = inlined_call_operand.vmem [shape: f32[1,128], index: 7, kind: output, shape index: {}]
  %s8 = sld [smem:[#allocation0]]
  $region38: #{simple_nn_forward.1} parent=0
    _
  %s10 = ssub.s32 1, %s8
  %s11 = scalar_select 0, %s10, %s8
  %v12 = vstv %s6
  %13 = vst [vmem:[#allocation2] sm:$0x1] %v12
  // Predicated region
  $region2: #{simple_nn_forward.1} parent=0 // pred_check
    _
  $region3: #{simple_nn_forward.1} parent=0 // pred_check_branch
    %15 = sbr.rel (0) target = $region5
  $region4: #{simple_nn_forward.1} parent=0 // pred_region
    _
  $region5: #{simple_nn_forward.1} parent=0 // pred_fallthru
    _
  // Predicated region
  $region6: #{simple_nn_forward.1} parent=0 // pred_check
    _
  $region7: #{simple_nn_forward.1} parent=0 // pred_check_branch
    %17 = sbr.rel (0) target = $region9
  $region8: #{simple_nn_forward.1} parent=0 // pred_region
    _
  $region9: #{simple_nn_forward.1} parent=0 // pred_fallthru
    _
  // Predicated region
  $region10: #{simple_nn_forward.1} parent=0 // pred_check
    _
  $region11: #{simple_nn_forward.1} parent=0 // pred_check_branch
    %19 = sbr.rel (0) target = $region13
  $region12: #{simple_nn_forward.1} parent=0 // pred_region
    _
  $region13: #{simple_nn_forward.1} parent=0 // pred_fallthru
    _
  // Predicated region
  $region14: #{simple_nn_forward.1} parent=0 // pred_check
    _
  $region15: #{simple_nn_forward.1} parent=0 // pred_check_branch
    %21 = sbr.rel (0) target = $region17
  $region16: #{simple_nn_forward.1} parent=0 // pred_region
    _
  $region17: #{simple_nn_forward.1} parent=0 // pred_fallthru
    _
  // Predicated region
  $region18: #{simple_nn_forward.1} parent=0 // pred_check
    _
  $region19: #{simple_nn_forward.1} parent=0 // pred_check_branch
    %23 = sbr.rel (0) target = $region21
  $region20: #{simple_nn_forward.1} parent=0 // pred_region
    _
  $region21: #{simple_nn_forward.1} parent=0 // pred_fallthru
    _
  // Predicated region
  $region22: #{simple_nn_forward.1} parent=0 // pred_check
    _
  $region23: #{simple_nn_forward.1} parent=0 // pred_check_branch
    %25 = sbr.rel (0) target = $region25
  $region24: #{simple_nn_forward.1} parent=0 // pred_region
    _
  $region25: #{simple_nn_forward.1} parent=0 // pred_fallthru
    _
  // Predicated region
  $region26: #{simple_nn_forward.1} parent=0 // pred_check
    _
  $region27: #{simple_nn_forward.1} parent=0 // pred_check_branch
    %27 = sbr.rel (0) target = $region29
  $region28: #{simple_nn_forward.1} parent=0 // pred_region
    _
  $region29: #{simple_nn_forward.1} parent=0 // pred_fallthru
    _
  %v28 = vld [vmem:[%s0] sm:$0x1f]
  %v29 = vld [vmem:[%s1] sm:$0xff]
  %v30 = vld [vmem:[%s1 + $0x8] sm:$0xff]
  %v31 = vld [vmem:[%s1 + $0x10] sm:$0xff]
  %v32 = vld [vmem:[%s1 + $0x18] sm:$0xff]
  %v33 = vld [vmem:[%s1 + $0x20] sm:$0xff]
  %v34 = vld [vmem:[%s1 + $0x28] sm:$0xff]
  %v35 = vld [vmem:[%s1 + $0x30] sm:$0xff]
  %v36 = vld [vmem:[%s1 + $0x38] sm:$0xff]
  %v37 = vld [vmem:[%s2] sm:$0xff]
  %v38 = vld [vmem:[%s2 + $0x8] sm:$0xff]
  %v39 = vld [vmem:[%s2 + $0x10] sm:$0xff]
  %v40 = vld [vmem:[%s2 + $0x18] sm:$0xff]
  %v41 = vld [vmem:[%s2 + $0x20] sm:$0xff]
  %v42 = vld [vmem:[%s2 + $0x28] sm:$0xff]
  %v43 = vld [vmem:[%s2 + $0x30] sm:$0xff]
  %v44 = vld [vmem:[%s2 + $0x38] sm:$0xff]
  %46 = vset.pattern.permute.xlu0 0
  %47 = vperm.xlu0 %46, %v37
  %v48 = vpop.permute.xlu0 %47
  %51 = vset.pattern.permute.xlu0 0
  %52 = vperm.xlu0 %51, %v38
  %v53 = vpop.permute.xlu0 %52
  %56 = vset.pattern.permute.xlu0 0
  %57 = vperm.xlu0 %56, %v39
  %v58 = vpop.permute.xlu0 %57
  %61 = vset.pattern.permute.xlu0 0
  %62 = vperm.xlu0 %61, %v40
  %v63 = vpop.permute.xlu0 %62
  %66 = vset.pattern.permute.xlu0 0
  %67 = vperm.xlu0 %66, %v41
  %v68 = vpop.permute.xlu0 %67
  %71 = vset.pattern.permute.xlu0 0
  %72 = vperm.xlu0 %71, %v42
  %v73 = vpop.permute.xlu0 %72
  %76 = vset.pattern.permute.xlu0 0
  %77 = vperm.xlu0 %76, %v43
  %v78 = vpop.permute.xlu0 %77
  %81 = vset.pattern.permute.xlu0 0
  %82 = vperm.xlu0 %81, %v44
  %v83 = vpop.permute.xlu0 %82
  %vm85 = vcmask 39936
  %v87 = vsel %vm85, %v29, 0
  %v90 = vsel %vm85, %v30, 0
  %v93 = vsel %vm85, %v31, 0
  %v96 = vsel %vm85, %v32, 0
  %v99 = vsel %vm85, %v33, 0
  %v102 = vsel %vm85, %v34, 0
  %v105 = vsel %vm85, %v35, 0
  %v108 = vsel %vm85, %v36, 0
  %vm110 = vcmask 1044480
  %v112 = vsel %vm110, %v28, 0
  %114 = vmatpush.msra.mxu0 0.0
  %115 = vmatpush.msra.mxu0 0.0
  %116 = vmatpush.msra.mxu0 0.0
  %117 = vmatpush.msra.mxu0 0.0
  %118 = vmatpush.msra.mxu0 0.0
  %119 = vmatpush.msra.mxu0 0.0
  %120 = vmatpush.msra.mxu0 0.0
  %121 = vmatpush.msra.mxu0 0.0
  %122 = vmatpush.msra.mxu0 0.0
  %123 = vmatpush.msra.mxu0 0.0
  %124 = vmatpush.msra.mxu0 0.0
  %125 = vmatpush.msra.mxu0 0.0
  %126 = vmatpush.msra.mxu0 0.0
  %127 = vmatpush.msra.mxu0 0.0
  %128 = vmatpush.msra.mxu0 0.0
  %129 = vmatpush.msra.mxu0 %v112
  %130 = vmatmul.f32.gmra.mxu0 %v87
  %v131 = vpop.f32.mrf.mxu0
  %v132 = vadd.f32 %v48, %v131
  %133 = vmatmul.f32.gmra.mxu0 %v90
  %v134 = vpop.f32.mrf.mxu0
  %v135 = vadd.f32 %v53, %v134
  %136 = vmatmul.f32.gmra.mxu0 %v93
  %v137 = vpop.f32.mrf.mxu0
  %v138 = vadd.f32 %v58, %v137
  %139 = vmatmul.f32.gmra.mxu0 %v96
  %v140 = vpop.f32.mrf.mxu0
  %v141 = vadd.f32 %v63, %v140
  %142 = vmatmul.f32.gmra.mxu0 %v99
  %v143 = vpop.f32.mrf.mxu0
  %v144 = vadd.f32 %v68, %v143
  %145 = vmatmul.f32.gmra.mxu0 %v102
  %v146 = vpop.f32.mrf.mxu0
  %v147 = vadd.f32 %v73, %v146
  %148 = vmatmul.f32.gmra.mxu0 %v105
  %v149 = vpop.f32.mrf.mxu0
  %v150 = vadd.f32 %v78, %v149
  %151 = vmatmul.f32.gmra.mxu0 %v108
  %v152 = vpop.f32.mrf.mxu0
  %v153 = vadd.f32 %v83, %v152
  %154 = vdwg.mxu0
  %v155 = vmax.f32 %v132, 0.0
  %v156 = vmax.f32 %v135, 0.0
  %v157 = vmax.f32 %v138, 0.0
  %v158 = vmax.f32 %v141, 0.0
  %v159 = vmax.f32 %v144, 0.0
  %v160 = vmax.f32 %v147, 0.0
  %v161 = vmax.f32 %v150, 0.0
  %v162 = vmax.f32 %v153, 0.0
  %v163 = vld [vmem:[%s3] sm:$0xff]
  %v164 = vld [vmem:[%s3 + $0x8] sm:$0xff]
  %v165 = vld [vmem:[%s3 + $0x10] sm:$0xff]
  %v166 = vld [vmem:[%s3 + $0x18] sm:$0xff]
  %v167 = vld [vmem:[%s4] sm:$0xff]
  %v168 = vld [vmem:[%s4 + $0x8] sm:$0xff]
  %v169 = vld [vmem:[%s4 + $0x10] sm:$0xff]
  %v170 = vld [vmem:[%s4 + $0x18] sm:$0xff]
  %172 = vset.pattern.permute.xlu0 0
  %173 = vperm.xlu0 %172, %v167
  %v174 = vpop.permute.xlu0 %173
  %177 = vset.pattern.permute.xlu0 0
  %178 = vperm.xlu0 %177, %v168
  %v179 = vpop.permute.xlu0 %178
  %182 = vset.pattern.permute.xlu0 0
  %183 = vperm.xlu0 %182, %v169
  %v184 = vpop.permute.xlu0 %183
  %187 = vset.pattern.permute.xlu0 0
  %188 = vperm.xlu0 %187, %v170
  %v189 = vpop.permute.xlu0 %188
  %vm191 = vcmask 523264
  %v193 = vsel %vm191, %v163, 0
  %v196 = vsel %vm191, %v164, 0
  %v199 = vsel %vm191, %v165, 0
  %v202 = vsel %vm191, %v166, 0
  %204 = vmatpush.msra.mxu0 0.0
  %205 = vmatpush.msra.mxu0 0.0
  %206 = vmatpush.msra.mxu0 0.0
  %207 = vmatpush.msra.mxu0 0.0
  %208 = vmatpush.msra.mxu0 0.0
  %209 = vmatpush.msra.mxu0 0.0
  %210 = vmatpush.msra.mxu0 0.0
  %211 = vmatpush.msra.mxu0 0.0
  %212 = vmatpush.msra.mxu0 %v162
  %213 = vmatpush.msra.mxu0 %v161
  %214 = vmatpush.msra.mxu0 %v160
  %215 = vmatpush.msra.mxu0 %v159
  %216 = vmatpush.msra.mxu0 %v158
  %217 = vmatpush.msra.mxu0 %v157
  %218 = vmatpush.msra.mxu0 %v156
  %219 = vmatpush.msra.mxu0 %v155
  %220 = vmatmul.f32.gmra.mxu0 %v193
  %v221 = vpop.f32.mrf.mxu0
  %v222 = vadd.f32 %v174, %v221
  %223 = vmatmul.f32.gmra.mxu0 %v196
  %v224 = vpop.f32.mrf.mxu0
  %v225 = vadd.f32 %v179, %v224
  %226 = vmatmul.f32.gmra.mxu0 %v199
  %v227 = vpop.f32.mrf.mxu0
  %v228 = vadd.f32 %v184, %v227
  %229 = vmatmul.f32.gmra.mxu0 %v202
  %v230 = vpop.f32.mrf.mxu0
  %v231 = vadd.f32 %v189, %v230
  %232 = vdwg.mxu0
  %v233 = vmax.f32 %v222, 0.0
  %v234 = vmax.f32 %v225, 0.0
  %v235 = vmax.f32 %v228, 0.0
  %v236 = vmax.f32 %v231, 0.0
  %v237 = vld [vmem:[%s5] sm:$0x1]
  %v238 = vld [vmem:[#allocation2] sm:$0x1]
  %240 = vset.pattern.permute.xlu0 0
  %241 = vperm.xlu0 %240, %v238
  %v242 = vpop.permute.xlu0 %241
  %v244 = vperm.slane %v242, 0
  %vm245 = vcmask 261120
  %v247 = vsel %vm245, %v237, 0
  %249 = vmatpush.msra.mxu0 0.0
  %250 = vmatpush.msra.mxu0 0.0
  %251 = vmatpush.msra.mxu0 0.0
  %252 = vmatpush.msra.mxu0 0.0
  %253 = vmatpush.msra.mxu0 0.0
  %254 = vmatpush.msra.mxu0 0.0
  %255 = vmatpush.msra.mxu0 0.0
  %256 = vmatpush.msra.mxu0 0.0
  %257 = vmatpush.msra.mxu0 0.0
  %258 = vmatpush.msra.mxu0 0.0
  %259 = vmatpush.msra.mxu0 0.0
  %260 = vmatpush.msra.mxu0 0.0
  %261 = vmatpush.msra.mxu0 %v236
  %262 = vmatpush.msra.mxu0 %v235
  %263 = vmatpush.msra.mxu0 %v234
  %264 = vmatpush.msra.mxu0 %v233
  %265 = vmatmul.f32.gmra.mxu0 %v247
  %v266 = vpop.f32.mrf.mxu0
  %v267 = vadd.f32 %v244, %v266
  %268 = vdwg.mxu0
  %269 = vst [vmem:[%s7] sm:$0x1] %v267
  // Predicated region
  $region30: #{simple_nn_forward.1} parent=0 // pred_check
    _
  $region31: #{simple_nn_forward.1} parent=0 // pred_check_branch
    %271 = sbr.rel (0) target = $region33
  $region32: #{simple_nn_forward.1} parent=0 // pred_region
    _
  $region33: #{simple_nn_forward.1} parent=0 // pred_fallthru
    _
  // Predicated region
  $region34: #{simple_nn_forward.1} parent=0 // pred_check
    _
  $region35: #{simple_nn_forward.1} parent=0 // pred_check_branch
    %273 = sbr.rel (0) target = $region37
  $region36: #{simple_nn_forward.1} parent=0 // pred_region
    _
  $region37: #{simple_nn_forward.1} parent=0 // pred_fallthru
    _

</llo_original>
